<compile_context>
chip_gen: v6e
topology: v6e:2x2x1
jax: 0.10.0
libtpu: 0.0.40
codegen_flags: <defaults>
</compile_context>

<pallas_src>
import jax
import jax.numpy as jnp
from jax import lax
from jax.experimental import pallas as pl
from jax.experimental.pallas import tpu as pltpu


def _ebm_mlp_kernel(z_ref, w1_ref, b1_ref, w2_ref, b2_ref, w3_ref, b3_ref, o_ref):
    """z_ref: (TB, input_dim) natural layout; weights PyTorch-native (fan_out, fan_in).

    Layer 1 contracts input_dim of both operands so the activation comes out as
    (feat, TB): batch lives on the lane axis for every MXU matmul and the final
    store is lane-dense.  All compute is f32 (bias/ReLU tail included -- v5e has
    no bf16 VPU path).
    """
    # Layer 1: Linear + ReLU  --  (feat, in) x (TB, in) contracted on `in` -> (feat, TB)
    h1 = lax.dot_general(
        w1_ref[...], z_ref[...],
        dimension_numbers=(((1,), (1,)), ((), ())),
        preferred_element_type=jnp.float32,
    )
    h1 = jnp.maximum(h1 + b1_ref[...], 0.0)

    # Layer 2: Linear + ReLU  --  (feat, feat) @ (feat, TB) -> (feat, TB)
    h2 = jnp.dot(w2_ref[...], h1, preferred_element_type=jnp.float32)
    h2 = jnp.maximum(h2 + b2_ref[...], 0.0)

    # Layer 3: energy head  --  (out, feat) @ (feat, TB) -> lane-dense (out, TB)
    out = jnp.dot(w3_ref[...], h2, preferred_element_type=jnp.float32)
    o_ref[...] = (out + b3_ref[...]).astype(o_ref.dtype)


def _round_up(x, m):
    return ((x + m - 1) // m) * m


def _tensorcores_per_chip():
    """2 TensorCores on v7x, 1 on v5e/v6e (fallback: 1)."""
    try:
        kind = (jax.devices()[0].device_kind or "").lower()
    except Exception:
        return 1
    return 2 if ("v7" in kind or "7x" in kind) else 1


def ebm_forward_pallas(z_nchw, params, *, batch_tile=8192):
    """Forward pass of tiltedpriorEBM.

    z_nchw : (B, input_dim, 1, 1) float32
    params : dict with PyTorch-native layouts:
             w1 (feat,in), b1 (feat,1), w2 (feat,feat), b2 (feat,1),
             w3 (out,feat), b3 (out,1)
    returns: (B, output_dim, 1, 1) float32
    """
    B = z_nchw.shape[0]
    input_dim = z_nchw.shape[1]
    output_dim = params["w3"].shape[0]

    # torch .squeeze() -> (B, input_dim); fed to the kernel as-is (no transpose pass).
    z2d = z_nchw.reshape(B, input_dim)

    num_tc = _tensorcores_per_chip()

    # Batch tile selection:
    #   * as large as possible (grid-step overhead dominates at small tiles),
    #   * multiple of 128 lanes whenever the batch is split,
    #   * on v7x keep >=2 grid steps so the "parallel" axis shards over both cores.
    if B <= batch_tile:
        if num_tc >= 2 and B >= 256:
            tb = _round_up(pl.cdiv(B, 2), 128)   # 2 steps for megacore sharding
        else:
            tb = B                               # single full-extent block
    else:
        tb = max(128, (batch_tile // 128) * 128)
    grid = (pl.cdiv(B, tb),)

    w1, b1 = params["w1"], params["b1"]
    w2, b2 = params["w2"], params["b2"]
    w3, b3 = params["w3"], params["b3"]

    const2d = lambda i: (0, 0)   # weights/biases: resident, same block every step

    out_t = pl.pallas_call(
        _ebm_mlp_kernel,
        out_shape=jax.ShapeDtypeStruct((output_dim, B), jnp.float32),
        grid=grid,
        in_specs=[
            pl.BlockSpec((tb, input_dim), lambda i: (i, 0)),   # z: tiled over batch
            pl.BlockSpec(w1.shape, const2d),
            pl.BlockSpec(b1.shape, const2d),
            pl.BlockSpec(w2.shape, const2d),
            pl.BlockSpec(b2.shape, const2d),
            pl.BlockSpec(w3.shape, const2d),
            pl.BlockSpec(b3.shape, const2d),
        ],
        out_specs=pl.BlockSpec((output_dim, tb), lambda i: (0, i)),
        compiler_params=pltpu.CompilerParams(
            dimension_semantics=("parallel",),      # megacore shard on v7x
            vmem_limit_bytes=32 * 1024 * 1024,      # safe vs v7x 64 MiB physical VMEM
        ),
    )(z2d, w1, b1, w2, b2, w3, b3)

    # (out, B) -> .view(-1, output_dim, 1, 1)
    return out_t.T.reshape(-1, output_dim, 1, 1)


def init_params(key, input_dim, feature_dim, output_dim):
    """nn.Linear-style init (uniform +/- 1/sqrt(fan_in)), PyTorch-native layout:
    weights (fan_out, fan_in), biases (fan_out, 1)."""
    ks = jax.random.split(key, 6)

    def lin(kw, kb, fan_in, fan_out):
        bound = 1.0 / jnp.sqrt(fan_in)
        w = jax.random.uniform(kw, (fan_out, fan_in), jnp.float32, -bound, bound)
        b = jax.random.uniform(kb, (fan_out, 1), jnp.float32, -bound, bound)
        return w, b

    w1, b1 = lin(ks[0], ks[1], input_dim, feature_dim)
    w2, b2 = lin(ks[2], ks[3], feature_dim, feature_dim)
    w3, b3 = lin(ks[4], ks[5], feature_dim, output_dim)
    return {"w1": w1, "b1": b1, "w2": w2, "b2": b2, "w3": w3, "b3": b3}


def _reference(z_nchw, params, output_dim):
    """Pure-JAX f32 reference of the same forward (x @ W.T + b, like PyTorch)."""
    B, input_dim = z_nchw.shape[0], z_nchw.shape[1]
    z2d = z_nchw.reshape(B, input_dim)
    h1 = jnp.maximum(z2d @ params["w1"].T + params["b1"].T, 0.0)
    h2 = jnp.maximum(h1 @ params["w2"].T + params["b2"].T, 0.0)
    return (h2 @ params["w3"].T + params["b3"].T).reshape(-1, output_dim, 1, 1)


if __name__ == "__main__":
    # Small, module-consistent shapes.
    input_dim, feature_dim, output_dim = 16, 64, 1

    key = jax.random.PRNGKey(0)
    k_z1, k_z2, k_p = jax.random.split(key, 3)
    params = init_params(k_p, input_dim, feature_dim, output_dim)

    # ---- Test 1: default (large) batch tile, divisible batch -------------------
    B1 = 512
    z1 = jax.random.normal(k_z1, (B1, input_dim, 1, 1), dtype=jnp.float32)
    energy1 = jax.block_until_ready(ebm_forward_pallas(z1, params))
    ref1 = _reference(z1, params, output_dim)
    assert energy1.shape == (B1, output_dim, 1, 1), energy1.shape
    err1 = float(jnp.max(jnp.abs(energy1 - ref1)))
    assert jnp.allclose(energy1, ref1, atol=1e-4, rtol=1e-4), err1

    # ---- Test 2: non-divisible batch across >1 grid step (padding/mask guard) --
    B2 = 300
    z2 = jax.random.normal(k_z2, (B2, input_dim, 1, 1), dtype=jnp.float32)
    energy2 = jax.block_until_ready(ebm_forward_pallas(z2, params, batch_tile=256))
    ref2 = _reference(z2, params, output_dim)
    assert energy2.shape == (B2, output_dim, 1, 1), energy2.shape
    err2 = float(jnp.max(jnp.abs(energy2 - ref2)))
    assert jnp.allclose(energy2, ref2, atol=1e-4, rtol=1e-4), err2

    print("KERNEL_OK")
</pallas_src>

<mosaic_0001>
module attributes {stable_mosaic.version = 11 : i64} {
  func.func @_ebm_mlp_kernel(%arg0: i32, %arg1: memref<512x16xf32, #tpu.memory_space<vmem>>, %arg2: memref<64x16xf32, #tpu.memory_space<vmem>>, %arg3: memref<64x1xf32, #tpu.memory_space<vmem>>, %arg4: memref<64x64xf32, #tpu.memory_space<vmem>>, %arg5: memref<64x1xf32, #tpu.memory_space<vmem>>, %arg6: memref<1x64xf32, #tpu.memory_space<vmem>>, %arg7: memref<1x1xf32, #tpu.memory_space<vmem>>, %arg8: memref<1x512xf32, #tpu.memory_space<vmem>>) attributes {dimension_semantics = [#tpu.dimension_semantics<parallel>], iteration_bounds = array<i64: 1>, scalar_prefetch = 0 : i64, scratch_operands = 0 : i64, tpu.core_type = #tpu.core_type<tc>, window_params = [{transform_indices = @transform_0, window_bounds = array<i64: 512, 16>}, {pipeline_mode = #tpu.pipeline_mode<synchronous>, transform_indices = @transform_1, window_bounds = array<i64: 64, 16>}, {pipeline_mode = #tpu.pipeline_mode<synchronous>, transform_indices = @transform_2, window_bounds = array<i64: 64, 1>}, {pipeline_mode = #tpu.pipeline_mode<synchronous>, transform_indices = @transform_3, window_bounds = array<i64: 64, 64>}, {pipeline_mode = #tpu.pipeline_mode<synchronous>, transform_indices = @transform_4, window_bounds = array<i64: 64, 1>}, {pipeline_mode = #tpu.pipeline_mode<synchronous>, transform_indices = @transform_5, window_bounds = array<i64: 1, 64>}, {pipeline_mode = #tpu.pipeline_mode<synchronous>, transform_indices = @transform_6, window_bounds = array<i64: 1, 1>}, {transform_indices = @transform_7, window_bounds = array<i64: 1, 512>}]} {
    %c0 = arith.constant 0 : index
    %c0_0 = arith.constant 0 : index
    %0 = vector.load %arg2[%c0, %c0_0] : memref<64x16xf32, #tpu.memory_space<vmem>>, vector<64x16xf32>
    %c0_1 = arith.constant 0 : index
    %c0_2 = arith.constant 0 : index
    %1 = vector.load %arg1[%c0_1, %c0_2] : memref<512x16xf32, #tpu.memory_space<vmem>>, vector<512x16xf32>
    %cst = arith.constant dense<0.000000e+00> : vector<64x512xf32>
    %2 = tpu.matmul %0, %1, %cst {dimension_numbers = #tpu.dot_dimension_numbers<[1], [1], [0], [0], [0, 0, 1, 0], [], []>} : vector<64x16xf32>, vector<512x16xf32>, vector<64x512xf32> -> vector<64x512xf32>
    %c0_3 = arith.constant 0 : index
    %c0_4 = arith.constant 0 : index
    %3 = vector.load %arg3[%c0_3, %c0_4] : memref<64x1xf32, #tpu.memory_space<vmem>>, vector<64x1xf32>
    %4 = vector.broadcast %3 : vector<64x1xf32> to vector<64x512xf32>
    %5 = arith.addf %2, %4 : vector<64x512xf32>
    %cst_5 = arith.constant 0.000000e+00 : f32
    %6 = vector.broadcast %cst_5 : f32 to vector<64x512xf32>
    %7 = arith.maximumf %5, %6 : vector<64x512xf32>
    %c0_6 = arith.constant 0 : index
    %c0_7 = arith.constant 0 : index
    %8 = vector.load %arg4[%c0_6, %c0_7] : memref<64x64xf32, #tpu.memory_space<vmem>>, vector<64x64xf32>
    %cst_8 = arith.constant dense<0.000000e+00> : vector<64x512xf32>
    %9 = tpu.matmul %8, %7, %cst_8 {dimension_numbers = #tpu.dot_dimension_numbers<[1], [0], [0], [1], [0, 0, 1, 1], [], []>} : vector<64x64xf32>, vector<64x512xf32>, vector<64x512xf32> -> vector<64x512xf32>
    %c0_9 = arith.constant 0 : index
    %c0_10 = arith.constant 0 : index
    %10 = vector.load %arg5[%c0_9, %c0_10] : memref<64x1xf32, #tpu.memory_space<vmem>>, vector<64x1xf32>
    %11 = vector.broadcast %10 : vector<64x1xf32> to vector<64x512xf32>
    %12 = arith.addf %9, %11 : vector<64x512xf32>
    %cst_11 = arith.constant 0.000000e+00 : f32
    %13 = vector.broadcast %cst_11 : f32 to vector<64x512xf32>
    %14 = arith.maximumf %12, %13 : vector<64x512xf32>
    %c0_12 = arith.constant 0 : index
    %c0_13 = arith.constant 0 : index
    %15 = vector.load %arg6[%c0_12, %c0_13] : memref<1x64xf32, #tpu.memory_space<vmem>>, vector<1x64xf32>
    %cst_14 = arith.constant dense<0.000000e+00> : vector<1x512xf32>
    %16 = tpu.matmul %15, %14, %cst_14 {dimension_numbers = #tpu.dot_dimension_numbers<[1], [0], [0], [1], [0, 0, 1, 1], [], []>} : vector<1x64xf32>, vector<64x512xf32>, vector<1x512xf32> -> vector<1x512xf32>
    %c0_15 = arith.constant 0 : index
    %c0_16 = arith.constant 0 : index
    %17 = vector.load %arg7[%c0_15, %c0_16] : memref<1x1xf32, #tpu.memory_space<vmem>>, vector<1x1xf32>
    %18 = vector.broadcast %17 : vector<1x1xf32> to vector<1x512xf32>
    %19 = arith.addf %16, %18 : vector<1x512xf32>
    %c0_17 = arith.constant 0 : index
    %c0_18 = arith.constant 0 : index
    %20 = vector.load %arg8[%c0_17, %c0_18] : memref<1x512xf32, #tpu.memory_space<vmem>>, vector<1x512xf32>
    tpu.vector_store %arg8[%c0_17, %c0_18], %19 {strides = array<i32>} : memref<1x512xf32, #tpu.memory_space<vmem>>, vector<1x512xf32>,
    return
  }
  func.func @transform_0(%arg0: i32) -> (i32, i32) {
    %c0_i32 = arith.constant 0 : i32
    %c0_i32_0 = arith.constant 0 : i32
    return %arg0, %c0_i32 : i32, i32
  }
  func.func @transform_1(%arg0: i32) -> (i32, i32) {
    %c0_i32 = arith.constant 0 : i32
    %c0_i32_0 = arith.constant 0 : i32
    %c0_i32_1 = arith.constant 0 : i32
    return %c0_i32, %c0_i32_0 : i32, i32
  }
  func.func @transform_2(%arg0: i32) -> (i32, i32) {
    %c0_i32 = arith.constant 0 : i32
    %c0_i32_0 = arith.constant 0 : i32
    %c0_i32_1 = arith.constant 0 : i32
    return %c0_i32, %c0_i32_0 : i32, i32
  }
  func.func @transform_3(%arg0: i32) -> (i32, i32) {
    %c0_i32 = arith.constant 0 : i32
    %c0_i32_0 = arith.constant 0 : i32
    %c0_i32_1 = arith.constant 0 : i32
    return %c0_i32, %c0_i32_0 : i32, i32
  }
  func.func @transform_4(%arg0: i32) -> (i32, i32) {
    %c0_i32 = arith.constant 0 : i32
    %c0_i32_0 = arith.constant 0 : i32
    %c0_i32_1 = arith.constant 0 : i32
    return %c0_i32, %c0_i32_0 : i32, i32
  }
  func.func @transform_5(%arg0: i32) -> (i32, i32) {
    %c0_i32 = arith.constant 0 : i32
    %c0_i32_0 = arith.constant 0 : i32
    %c0_i32_1 = arith.constant 0 : i32
    return %c0_i32, %c0_i32_0 : i32, i32
  }
  func.func @transform_6(%arg0: i32) -> (i32, i32) {
    %c0_i32 = arith.constant 0 : i32
    %c0_i32_0 = arith.constant 0 : i32
    %c0_i32_1 = arith.constant 0 : i32
    return %c0_i32, %c0_i32_0 : i32, i32
  }
  func.func @transform_7(%arg0: i32) -> (i32, i32) {
    %c0_i32 = arith.constant 0 : i32
    %c0_i32_0 = arith.constant 0 : i32
    return %c0_i32, %arg0 : i32, i32
  }
}

</mosaic_0001>

<llo_original>
// kernel: tpu_custom_call.1
$region0: #{tpu_custom_call.1}
  #allocation0 [shape = 'u32[]', space=smem, size = 0x4, offset = 0x4, fixed_abs, tag = 'smem constant byte address 0x4 - core index']
  #allocation1 [shape = 'u32[144,128]{1,0:T(1,128)}', space=vmem, size = 0x12000, scoped, tag = 'internal scratch']
  #allocation2 [shape = 'f32[1,1]{1,0:T(1,128)S(1)}', space=vmem, size = 0x200, scoped, tag = 'scoped memory for tpu_custom_call.1']
  %s0 = inlined_call_operand.vmem [shape: f32[512,16], index: 0, kind: input, shape index: {}]
  %s1 = inlined_call_operand.vmem [shape: f32[64,16], index: 1, kind: input, shape index: {}]
  %s2 = inlined_call_operand.vmem [shape: f32[64,1], index: 2, kind: input, shape index: {}]
  %s3 = inlined_call_operand.vmem [shape: f32[64,64], index: 3, kind: input, shape index: {}]
  %s4 = inlined_call_operand.vmem [shape: f32[64,1], index: 4, kind: input, shape index: {}]
  %s5 = inlined_call_operand.vmem [shape: f32[1,64], index: 5, kind: input, shape index: {}]
  %s6 = inlined_call_operand.<no memory space> [shape: f32[1,1], index: 6, kind: input, shape index: {}]
  %s7 = inlined_call_operand.hbm [shape: f32[1,512], index: 7, kind: output, shape index: {}]
  %s8 = sld [smem:[#allocation0]]
  $region38: #{tpu_custom_call.1} parent=0
    _
  %s10 = ssub.s32 1, %s8
  %s11 = scalar_select 0, %s10, %s8
  %v12 = vstv %s6
  %13 = vst [vmem:[#allocation2] sm:$0x1] %v12
  $region1: #{tpu_custom_call.1} parent=0
    #allocation3 [shape = 'u8[2048]{0}', space=vmem, size = 0x800, scoped, tag = 'output window, operand 0, single buffered']
    #allocation4 [shape = 's32[1]{0}', space=sflag, size = 0x4, scoped, tag = 'scoped memory for tpu_custom_call.1']
    %14 = vsyncpa [#allocation4], 0
    // Predicated region
    $region2: #{tpu_custom_call.1} parent=1 // pred_check
      _
    $region3: #{tpu_custom_call.1} parent=1 // pred_check_branch
      %16 = sbr.rel (0) target = $region5
    $region4: #{tpu_custom_call.1} parent=1 // pred_region
      _
    $region5: #{tpu_custom_call.1} parent=1 // pred_fallthru
      _
    // Predicated region
    $region6: #{tpu_custom_call.1} parent=1 // pred_check
      _
    $region7: #{tpu_custom_call.1} parent=1 // pred_check_branch
      %18 = sbr.rel (0) target = $region9
    $region8: #{tpu_custom_call.1} parent=1 // pred_region
      _
    $region9: #{tpu_custom_call.1} parent=1 // pred_fallthru
      _
    // Predicated region
    $region10: #{tpu_custom_call.1} parent=1 // pred_check
      _
    $region11: #{tpu_custom_call.1} parent=1 // pred_check_branch
      %20 = sbr.rel (0) target = $region13
    $region12: #{tpu_custom_call.1} parent=1 // pred_region
      _
    $region13: #{tpu_custom_call.1} parent=1 // pred_fallthru
      _
    // Predicated region
    $region14: #{tpu_custom_call.1} parent=1 // pred_check
      _
    $region15: #{tpu_custom_call.1} parent=1 // pred_check_branch
      %22 = sbr.rel (0) target = $region17
    $region16: #{tpu_custom_call.1} parent=1 // pred_region
      _
    $region17: #{tpu_custom_call.1} parent=1 // pred_fallthru
      _
    // Predicated region
    $region18: #{tpu_custom_call.1} parent=1 // pred_check
      _
    $region19: #{tpu_custom_call.1} parent=1 // pred_check_branch
      %24 = sbr.rel (0) target = $region21
    $region20: #{tpu_custom_call.1} parent=1 // pred_region
      _
    $region21: #{tpu_custom_call.1} parent=1 // pred_fallthru
      _
    // Predicated region
    $region22: #{tpu_custom_call.1} parent=1 // pred_check
      _
    $region23: #{tpu_custom_call.1} parent=1 // pred_check_branch
      %26 = sbr.rel (0) target = $region25
    $region24: #{tpu_custom_call.1} parent=1 // pred_region
      _
    $region25: #{tpu_custom_call.1} parent=1 // pred_fallthru
      _
    // Predicated region
    $region26: #{tpu_custom_call.1} parent=1 // pred_check
      _
    $region27: #{tpu_custom_call.1} parent=1 // pred_check_branch
      %28 = sbr.rel (0) target = $region29
    $region28: #{tpu_custom_call.1} parent=1 // pred_region
      _
    $region29: #{tpu_custom_call.1} parent=1 // pred_fallthru
      _
    %v29 = vld [vmem:[%s1] sm:$0xff]
    %v30 = vld [vmem:[%s1 + $0x8] sm:$0xff]
    %v31 = vld [vmem:[%s1 + $0x10] sm:$0xff]
    %v32 = vld [vmem:[%s1 + $0x18] sm:$0xff]
    %v33 = vld [vmem:[%s1 + $0x20] sm:$0xff]
    %v34 = vld [vmem:[%s1 + $0x28] sm:$0xff]
    %v35 = vld [vmem:[%s1 + $0x30] sm:$0xff]
    %v36 = vld [vmem:[%s1 + $0x38] sm:$0xff]
    %v37 = vld [vmem:[%s0] sm:$0xff]
    %v38 = vld [vmem:[%s0 + $0x8] sm:$0xff]
    %v39 = vld [vmem:[%s0 + $0x10] sm:$0xff]
    %v40 = vld [vmem:[%s0 + $0x18] sm:$0xff]
    %v41 = vld [vmem:[%s0 + $0x20] sm:$0xff]
    %v42 = vld [vmem:[%s0 + $0x28] sm:$0xff]
    %v43 = vld [vmem:[%s0 + $0x30] sm:$0xff]
    %v44 = vld [vmem:[%s0 + $0x38] sm:$0xff]
    %v45 = vld [vmem:[%s0 + $0x40] sm:$0xff]
    %v46 = vld [vmem:[%s0 + $0x48] sm:$0xff]
    %v47 = vld [vmem:[%s0 + $0x50] sm:$0xff]
    %v48 = vld [vmem:[%s0 + $0x58] sm:$0xff]
    %v49 = vld [vmem:[%s0 + $0x60] sm:$0xff]
    %v50 = vld [vmem:[%s0 + $0x68] sm:$0xff]
    %v51 = vld [vmem:[%s0 + $0x70] sm:$0xff]
    %v52 = vld [vmem:[%s0 + $0x78] sm:$0xff]
    %v53 = vld [vmem:[%s0 + $0x80] sm:$0xff]
    %v54 = vld [vmem:[%s0 + $0x88] sm:$0xff]
    %v55 = vld [vmem:[%s0 + $0x90] sm:$0xff]
    %v56 = vld [vmem:[%s0 + $0x98] sm:$0xff]
    %v57 = vld [vmem:[%s0 + $0xa0] sm:$0xff]
    %v58 = vld [vmem:[%s0 + $0xa8] sm:$0xff]
    %v59 = vld [vmem:[%s0 + $0xb0] sm:$0xff]
    %v60 = vld [vmem:[%s0 + $0xb8] sm:$0xff]
    %v61 = vld [vmem:[%s0 + $0xc0] sm:$0xff]
    %v62 = vld [vmem:[%s0 + $0xc8] sm:$0xff]
    %v63 = vld [vmem:[%s0 + $0xd0] sm:$0xff]
    %v64 = vld [vmem:[%s0 + $0xd8] sm:$0xff]
    %v65 = vld [vmem:[%s0 + $0xe0] sm:$0xff]
    %v66 = vld [vmem:[%s0 + $0xe8] sm:$0xff]
    %v67 = vld [vmem:[%s0 + $0xf0] sm:$0xff]
    %v68 = vld [vmem:[%s0 + $0xf8] sm:$0xff]
    %v69 = vld [vmem:[%s0 + $0x100] sm:$0xff]
    %v70 = vld [vmem:[%s0 + $0x108] sm:$0xff]
    %v71 = vld [vmem:[%s0 + $0x110] sm:$0xff]
    %v72 = vld [vmem:[%s0 + $0x118] sm:$0xff]
    %v73 = vld [vmem:[%s0 + $0x120] sm:$0xff]
    %v74 = vld [vmem:[%s0 + $0x128] sm:$0xff]
    %v75 = vld [vmem:[%s0 + $0x130] sm:$0xff]
    %v76 = vld [vmem:[%s0 + $0x138] sm:$0xff]
    %v77 = vld [vmem:[%s0 + $0x140] sm:$0xff]
    %v78 = vld [vmem:[%s0 + $0x148] sm:$0xff]
    %v79 = vld [vmem:[%s0 + $0x150] sm:$0xff]
    %v80 = vld [vmem:[%s0 + $0x158] sm:$0xff]
    %v81 = vld [vmem:[%s0 + $0x160] sm:$0xff]
    %v82 = vld [vmem:[%s0 + $0x168] sm:$0xff]
    %v83 = vld [vmem:[%s0 + $0x170] sm:$0xff]
    %v84 = vld [vmem:[%s0 + $0x178] sm:$0xff]
    %v85 = vld [vmem:[%s0 + $0x180] sm:$0xff]
    %v86 = vld [vmem:[%s0 + $0x188] sm:$0xff]
    %v87 = vld [vmem:[%s0 + $0x190] sm:$0xff]
    %v88 = vld [vmem:[%s0 + $0x198] sm:$0xff]
    %v89 = vld [vmem:[%s0 + $0x1a0] sm:$0xff]
    %v90 = vld [vmem:[%s0 + $0x1a8] sm:$0xff]
    %v91 = vld [vmem:[%s0 + $0x1b0] sm:$0xff]
    %v92 = vld [vmem:[%s0 + $0x1b8] sm:$0xff]
    %v93 = vld [vmem:[%s0 + $0x1c0] sm:$0xff]
    %v94 = vld [vmem:[%s0 + $0x1c8] sm:$0xff]
    %v95 = vld [vmem:[%s0 + $0x1d0] sm:$0xff]
    %v96 = vld [vmem:[%s0 + $0x1d8] sm:$0xff]
    %v97 = vld [vmem:[%s0 + $0x1e0] sm:$0xff]
    %v98 = vld [vmem:[%s0 + $0x1e8] sm:$0xff]
    %v99 = vld [vmem:[%s0 + $0x1f0] sm:$0xff]
    %v100 = vld [vmem:[%s0 + $0x1f8] sm:$0xff]
    %v101 = vld [vmem:[%s2] sm:$0xff]
    %v102 = vld [vmem:[%s2 + $0x8] sm:$0xff]
    %v103 = vld [vmem:[%s2 + $0x10] sm:$0xff]
    %v104 = vld [vmem:[%s2 + $0x18] sm:$0xff]
    %v105 = vld [vmem:[%s2 + $0x20] sm:$0xff]
    %v106 = vld [vmem:[%s2 + $0x28] sm:$0xff]
    %v107 = vld [vmem:[%s2 + $0x30] sm:$0xff]
    %v108 = vld [vmem:[%s2 + $0x38] sm:$0xff]
    %110 = vset.pattern.permute.xlu0 0
    %111 = vperm.xlu0 %110, %v101
    %v112 = vpop.permute.xlu0 %111
    %115 = vset.pattern.permute.xlu0 0
    %116 = vperm.xlu0 %115, %v102
    %v117 = vpop.permute.xlu0 %116
    %120 = vset.pattern.permute.xlu0 0
    %121 = vperm.xlu0 %120, %v103
    %v122 = vpop.permute.xlu0 %121
    %125 = vset.pattern.permute.xlu0 0
    %126 = vperm.xlu0 %125, %v104
    %v127 = vpop.permute.xlu0 %126
    %130 = vset.pattern.permute.xlu0 0
    %131 = vperm.xlu0 %130, %v105
    %v132 = vpop.permute.xlu0 %131
    %135 = vset.pattern.permute.xlu0 0
    %136 = vperm.xlu0 %135, %v106
    %v137 = vpop.permute.xlu0 %136
    %140 = vset.pattern.permute.xlu0 0
    %141 = vperm.xlu0 %140, %v107
    %v142 = vpop.permute.xlu0 %141
    %145 = vset.pattern.permute.xlu0 0
    %146 = vperm.xlu0 %145, %v108
    %v147 = vpop.permute.xlu0 %146
    %vm149 = vcmask 130048
    %v151 = vsel %vm149, %v29, 0
    %v154 = vsel %vm149, %v30, 0
    %v157 = vsel %vm149, %v31, 0
    %v160 = vsel %vm149, %v32, 0
    %v163 = vsel %vm149, %v33, 0
    %v166 = vsel %vm149, %v34, 0
    %v169 = vsel %vm149, %v35, 0
    %v172 = vsel %vm149, %v36, 0
    %v175 = vsel %vm149, %v37, 0
    %v178 = vsel %vm149, %v38, 0
    %v181 = vsel %vm149, %v39, 0
    %v184 = vsel %vm149, %v40, 0
    %v187 = vsel %vm149, %v41, 0
    %v190 = vsel %vm149, %v42, 0
    %v193 = vsel %vm149, %v43, 0
    %v196 = vsel %vm149, %v44, 0
    %v199 = vsel %vm149, %v45, 0
    %v202 = vsel %vm149, %v46, 0
    %v205 = vsel %vm149, %v47, 0
    %v208 = vsel %vm149, %v48, 0
    %v211 = vsel %vm149, %v49, 0
    %v214 = vsel %vm149, %v50, 0
    %v217 = vsel %vm149, %v51, 0
    %v220 = vsel %vm149, %v52, 0
    %v223 = vsel %vm149, %v53, 0
    %v226 = vsel %vm149, %v54, 0
    %v229 = vsel %vm149, %v55, 0
    %v232 = vsel %vm149, %v56, 0
    %v235 = vsel %vm149, %v57, 0
    %v238 = vsel %vm149, %v58, 0
    %v241 = vsel %vm149, %v59, 0
    %v244 = vsel %vm149, %v60, 0
    %v247 = vsel %vm149, %v61, 0
    %v250 = vsel %vm149, %v62, 0
    %v253 = vsel %vm149, %v63, 0
    %v256 = vsel %vm149, %v64, 0
    %v259 = vsel %vm149, %v65, 0
    %v262 = vsel %vm149, %v66, 0
    %v265 = vsel %vm149, %v67, 0
    %v268 = vsel %vm149, %v68, 0
    %v271 = vsel %vm149, %v69, 0
    %v274 = vsel %vm149, %v70, 0
    %v277 = vsel %vm149, %v71, 0
    %v280 = vsel %vm149, %v72, 0
    %v283 = vsel %vm149, %v73, 0
    %v286 = vsel %vm149, %v74, 0
    %v289 = vsel %vm149, %v75, 0
    %v292 = vsel %vm149, %v76, 0
    %v295 = vsel %vm149, %v77, 0
    %v298 = vsel %vm149, %v78, 0
    %v301 = vsel %vm149, %v79, 0
    %v304 = vsel %vm149, %v80, 0
    %v307 = vsel %vm149, %v81, 0
    %v310 = vsel %vm149, %v82, 0
    %v313 = vsel %vm149, %v83, 0
    %v316 = vsel %vm149, %v84, 0
    %v319 = vsel %vm149, %v85, 0
    %v322 = vsel %vm149, %v86, 0
    %v325 = vsel %vm149, %v87, 0
    %v328 = vsel %vm149, %v88, 0
    %v331 = vsel %vm149, %v89, 0
    %v334 = vsel %vm149, %v90, 0
    %v337 = vsel %vm149, %v91, 0
    %v340 = vsel %vm149, %v92, 0
    %v343 = vsel %vm149, %v93, 0
    %v346 = vsel %vm149, %v94, 0
    %v349 = vsel %vm149, %v95, 0
    %v352 = vsel %vm149, %v96, 0
    %v355 = vsel %vm149, %v97, 0
    %v358 = vsel %vm149, %v98, 0
    %v361 = vsel %vm149, %v99, 0
    %v364 = vsel %vm149, %v100, 0
    %366 = vmatprep.subr.mxu0 0.0
    %367 = vmatpush1.xpose.msra.mxu0 %v220
    %368 = vmatprep.subr.mxu0 0.0
    %369 = vmatpush1.xpose.msra.mxu0 %v217
    %370 = vmatprep.subr.mxu0 0.0
    %371 = vmatpush1.xpose.msra.mxu0 %v214
    %372 = vmatprep.subr.mxu0 0.0
    %373 = vmatpush1.xpose.msra.mxu0 %v211
    %374 = vmatprep.subr.mxu0 0.0
    %375 = vmatpush1.xpose.msra.mxu0 %v208
    %376 = vmatprep.subr.mxu0 0.0
    %377 = vmatpush1.xpose.msra.mxu0 %v205
    %378 = vmatprep.subr.mxu0 0.0
    %379 = vmatpush1.xpose.msra.mxu0 %v202
    %380 = vmatprep.subr.mxu0 0.0
    %381 = vmatpush1.xpose.msra.mxu0 %v199
    %382 = vmatprep.subr.mxu0 0.0
    %383 = vmatpush1.xpose.msra.mxu0 %v196
    %384 = vmatprep.subr.mxu0 0.0
    %385 = vmatpush1.xpose.msra.mxu0 %v193
    %386 = vmatprep.subr.mxu0 0.0
    %387 = vmatpush1.xpose.msra.mxu0 %v190
    %388 = vmatprep.subr.mxu0 0.0
    %389 = vmatpush1.xpose.msra.mxu0 %v187
    %390 = vmatprep.subr.mxu0 0.0
    %391 = vmatpush1.xpose.msra.mxu0 %v184
    %392 = vmatprep.subr.mxu0 0.0
    %393 = vmatpush1.xpose.msra.mxu0 %v181
    %394 = vmatprep.subr.mxu0 0.0
    %395 = vmatpush1.xpose.msra.mxu0 %v178
    %396 = vmatprep.subr.mxu0 0.0
    %397 = vmatpush1.xpose.msra.mxu0 %v175
    %398 = vmatprep.subr.mxu0 0.0
    %399 = vmatpush2.xpose.msra.mxu0 %v268
    %400 = vmatprep.subr.mxu0 0.0
    %401 = vmatpush2.xpose.msra.mxu0 %v265
    %402 = vmatprep.subr.mxu0 0.0
    %403 = vmatpush2.xpose.msra.mxu0 %v262
    %404 = vmatprep.subr.mxu0 0.0
    %405 = vmatpush2.xpose.msra.mxu0 %v259
    %406 = vmatprep.subr.mxu0 0.0
    %407 = vmatpush2.xpose.msra.mxu0 %v256
    %408 = vmatprep.subr.mxu0 0.0
    %409 = vmatpush2.xpose.msra.mxu0 %v253
    %410 = vmatprep.subr.mxu0 0.0
    %411 = vmatpush2.xpose.msra.mxu0 %v250
    %412 = vmatprep.subr.mxu0 0.0
    %413 = vmatpush2.xpose.msra.mxu0 %v247
    %414 = vmatprep.subr.mxu0 0.0
    %415 = vmatpush2.xpose.msra.mxu0 %v244
    %416 = vmatprep.subr.mxu0 0.0
    %417 = vmatpush2.xpose.msra.mxu0 %v241
    %418 = vmatprep.subr.mxu0 0.0
    %419 = vmatpush2.xpose.msra.mxu0 %v238
    %420 = vmatprep.subr.mxu0 0.0
    %421 = vmatpush2.xpose.msra.mxu0 %v235
    %422 = vmatprep.subr.mxu0 0.0
    %423 = vmatpush2.xpose.msra.mxu0 %v232
    %424 = vmatprep.subr.mxu0 0.0
    %425 = vmatpush2.xpose.msra.mxu0 %v229
    %426 = vmatprep.subr.mxu0 0.0
    %427 = vmatpush2.xpose.msra.mxu0 %v226
    %428 = vmatprep.subr.mxu0 0.0
    %429 = vmatpush2.xpose.msra.mxu0 %v223
    %430 = vmatprep.mubr.f32.mxu0 0.0
    %431 = vmatmul.mubr.f32.gmra.mxu0 %v151
    %v432 = vpop.f32.mrf.mxu0
    %v433 = vadd.f32 %v112, %v432
    %v434 = vpop.f32.mrf.mxu0
    %v435 = vadd.f32 %v112, %v434
    %436 = vmatprep.mubr.f32.mxu0 0.0
    %437 = vmatmul.mubr.f32.gmra.mxu0 %v154
    %v438 = vpop.f32.mrf.mxu0
    %v439 = vadd.f32 %v117, %v438
    %v440 = vpop.f32.mrf.mxu0
    %v441 = vadd.f32 %v117, %v440
    %442 = vmatprep.mubr.f32.mxu0 0.0
    %443 = vmatmul.mubr.f32.gmra.mxu0 %v157
    %v444 = vpop.f32.mrf.mxu0
    %v445 = vadd.f32 %v122, %v444
    %v446 = vpop.f32.mrf.mxu0
    %v447 = vadd.f32 %v122, %v446
    %448 = vmatprep.mubr.f32.mxu0 0.0
    %449 = vmatmul.mubr.f32.gmra.mxu0 %v160
    %v450 = vpop.f32.mrf.mxu0
    %v451 = vadd.f32 %v127, %v450
    %v452 = vpop.f32.mrf.mxu0
    %v453 = vadd.f32 %v127, %v452
    %454 = vmatprep.mubr.f32.mxu0 0.0
    %455 = vmatmul.mubr.f32.gmra.mxu0 %v163
    %v456 = vpop.f32.mrf.mxu0
    %v457 = vadd.f32 %v132, %v456
    %v458 = vpop.f32.mrf.mxu0
    %v459 = vadd.f32 %v132, %v458
    %460 = vmatprep.mubr.f32.mxu0 0.0
    %461 = vmatmul.mubr.f32.gmra.mxu0 %v166
    %v462 = vpop.f32.mrf.mxu0
    %v463 = vadd.f32 %v137, %v462
    %v464 = vpop.f32.mrf.mxu0
    %v465 = vadd.f32 %v137, %v464
    %466 = vmatprep.mubr.f32.mxu0 0.0
    %467 = vmatmul.mubr.f32.gmra.mxu0 %v169
    %v468 = vpop.f32.mrf.mxu0
    %v469 = vadd.f32 %v142, %v468
    %v470 = vpop.f32.mrf.mxu0
    %v471 = vadd.f32 %v142, %v470
    %472 = vmatprep.mubr.f32.mxu0 0.0
    %473 = vmatmul.mubr.f32.gmra.mxu0 %v172
    %v474 = vpop.f32.mrf.mxu0
    %v475 = vadd.f32 %v147, %v474
    %v476 = vpop.f32.mrf.mxu0
    %v477 = vadd.f32 %v147, %v476
    %478 = vdwg.mxu0
    %479 = vmatprep.subr.mxu0 0.0
    %480 = vmatpush1.xpose.msra.mxu0 %v316
    %481 = vmatprep.subr.mxu0 0.0
    %482 = vmatpush1.xpose.msra.mxu0 %v313
    %483 = vmatprep.subr.mxu0 0.0
    %484 = vmatpush1.xpose.msra.mxu0 %v310
    %485 = vmatprep.subr.mxu0 0.0
    %486 = vmatpush1.xpose.msra.mxu0 %v307
    %487 = vmatprep.subr.mxu0 0.0
    %488 = vmatpush1.xpose.msra.mxu0 %v304
    %489 = vmatprep.subr.mxu0 0.0
    %490 = vmatpush1.xpose.msra.mxu0 %v301
    %491 = vmatprep.subr.mxu0 0.0
    %492 = vmatpush1.xpose.msra.mxu0 %v298
    %493 = vmatprep.subr.mxu0 0.0
    %494 = vmatpush1.xpose.msra.mxu0 %v295
    %495 = vmatprep.subr.mxu0 0.0
    %496 = vmatpush1.xpose.msra.mxu0 %v292
    %497 = vmatprep.subr.mxu0 0.0
    %498 = vmatpush1.xpose.msra.mxu0 %v289
    %499 = vmatprep.subr.mxu0 0.0
    %500 = vmatpush1.xpose.msra.mxu0 %v286
    %501 = vmatprep.subr.mxu0 0.0
    %502 = vmatpush1.xpose.msra.mxu0 %v283
    %503 = vmatprep.subr.mxu0 0.0
    %504 = vmatpush1.xpose.msra.mxu0 %v280
    %505 = vmatprep.subr.mxu0 0.0
    %506 = vmatpush1.xpose.msra.mxu0 %v277
    %507 = vmatprep.subr.mxu0 0.0
    %508 = vmatpush1.xpose.msra.mxu0 %v274
    %509 = vmatprep.subr.mxu0 0.0
    %510 = vmatpush1.xpose.msra.mxu0 %v271
    %511 = vmatprep.subr.mxu0 0.0
    %512 = vmatpush2.xpose.msra.mxu0 %v364
    %513 = vmatprep.subr.mxu0 0.0
    %514 = vmatpush2.xpose.msra.mxu0 %v361
    %515 = vmatprep.subr.mxu0 0.0
    %516 = vmatpush2.xpose.msra.mxu0 %v358
    %517 = vmatprep.subr.mxu0 0.0
    %518 = vmatpush2.xpose.msra.mxu0 %v355
    %519 = vmatprep.subr.mxu0 0.0
    %520 = vmatpush2.xpose.msra.mxu0 %v352
    %521 = vmatprep.subr.mxu0 0.0
    %522 = vmatpush2.xpose.msra.mxu0 %v349
    %523 = vmatprep.subr.mxu0 0.0
    %524 = vmatpush2.xpose.msra.mxu0 %v346
    %525 = vmatprep.subr.mxu0 0.0
    %526 = vmatpush2.xpose.msra.mxu0 %v343
    %527 = vmatprep.subr.mxu0 0.0
    %528 = vmatpush2.xpose.msra.mxu0 %v340
    %529 = vmatprep.subr.mxu0 0.0
    %530 = vmatpush2.xpose.msra.mxu0 %v337
    %531 = vmatprep.subr.mxu0 0.0
    %532 = vmatpush2.xpose.msra.mxu0 %v334
    %533 = vmatprep.subr.mxu0 0.0
    %534 = vmatpush2.xpose.msra.mxu0 %v331
    %535 = vmatprep.subr.mxu0 0.0
    %536 = vmatpush2.xpose.msra.mxu0 %v328
    %537 = vmatprep.subr.mxu0 0.0
    %538 = vmatpush2.xpose.msra.mxu0 %v325
    %539 = vmatprep.subr.mxu0 0.0
    %540 = vmatpush2.xpose.msra.mxu0 %v322
    %541 = vmatprep.subr.mxu0 0.0
    %542 = vmatpush2.xpose.msra.mxu0 %v319
    %543 = vmatprep.mubr.f32.mxu0 0.0
    %544 = vmatmul.mubr.f32.gmra.mxu0 %v151
    %v545 = vpop.f32.mrf.mxu0
    %v546 = vadd.f32 %v112, %v545
    %v547 = vpop.f32.mrf.mxu0
    %v548 = vadd.f32 %v112, %v547
    %549 = vmatprep.mubr.f32.mxu0 0.0
    %550 = vmatmul.mubr.f32.gmra.mxu0 %v154
    %v551 = vpop.f32.mrf.mxu0
    %v552 = vadd.f32 %v117, %v551
    %v553 = vpop.f32.mrf.mxu0
    %v554 = vadd.f32 %v117, %v553
    %555 = vmatprep.mubr.f32.mxu0 0.0
    %556 = vmatmul.mubr.f32.gmra.mxu0 %v157
    %v557 = vpop.f32.mrf.mxu0
    %v558 = vadd.f32 %v122, %v557
    %v559 = vpop.f32.mrf.mxu0
    %v560 = vadd.f32 %v122, %v559
    %561 = vmatprep.mubr.f32.mxu0 0.0
    %562 = vmatmul.mubr.f32.gmra.mxu0 %v160
    %v563 = vpop.f32.mrf.mxu0
    %v564 = vadd.f32 %v127, %v563
    %v565 = vpop.f32.mrf.mxu0
    %v566 = vadd.f32 %v127, %v565
    %567 = vmatprep.mubr.f32.mxu0 0.0
    %568 = vmatmul.mubr.f32.gmra.mxu0 %v163
    %v569 = vpop.f32.mrf.mxu0
    %v570 = vadd.f32 %v132, %v569
    %v571 = vpop.f32.mrf.mxu0
    %v572 = vadd.f32 %v132, %v571
    %573 = vmatprep.mubr.f32.mxu0 0.0
    %574 = vmatmul.mubr.f32.gmra.mxu0 %v166
    %v575 = vpop.f32.mrf.mxu0
    %v576 = vadd.f32 %v137, %v575
    %v577 = vpop.f32.mrf.mxu0
    %v578 = vadd.f32 %v137, %v577
    %579 = vmatprep.mubr.f32.mxu0 0.0
    %580 = vmatmul.mubr.f32.gmra.mxu0 %v169
    %v581 = vpop.f32.mrf.mxu0
    %v582 = vadd.f32 %v142, %v581
    %v583 = vpop.f32.mrf.mxu0
    %v584 = vadd.f32 %v142, %v583
    %585 = vmatprep.mubr.f32.mxu0 0.0
    %586 = vmatmul.mubr.f32.gmra.mxu0 %v172
    %v587 = vpop.f32.mrf.mxu0
    %v588 = vadd.f32 %v147, %v587
    %v589 = vpop.f32.mrf.mxu0
    %v590 = vadd.f32 %v147, %v589
    %591 = vdwg.mxu0
    %v592 = vmax.f32 %v433, 0.0
    %v593 = vmax.f32 %v435, 0.0
    %v594 = vmax.f32 %v546, 0.0
    %v595 = vmax.f32 %v548, 0.0
    %v596 = vmax.f32 %v439, 0.0
    %v597 = vmax.f32 %v441, 0.0
    %v598 = vmax.f32 %v552, 0.0
    %v599 = vmax.f32 %v554, 0.0
    %v600 = vmax.f32 %v445, 0.0
    %v601 = vmax.f32 %v447, 0.0
    %v602 = vmax.f32 %v558, 0.0
    %v603 = vmax.f32 %v560, 0.0
    %v604 = vmax.f32 %v451, 0.0
    %v605 = vmax.f32 %v453, 0.0
    %v606 = vmax.f32 %v564, 0.0
    %v607 = vmax.f32 %v566, 0.0
    %v608 = vmax.f32 %v457, 0.0
    %v609 = vmax.f32 %v459, 0.0
    %v610 = vmax.f32 %v570, 0.0
    %v611 = vmax.f32 %v572, 0.0
    %v612 = vmax.f32 %v463, 0.0
    %v613 = vmax.f32 %v465, 0.0
    %v614 = vmax.f32 %v576, 0.0
    %v615 = vmax.f32 %v578, 0.0
    %v616 = vmax.f32 %v469, 0.0
    %v617 = vmax.f32 %v471, 0.0
    %v618 = vmax.f32 %v582, 0.0
    %v619 = vmax.f32 %v584, 0.0
    %v620 = vmax.f32 %v475, 0.0
    %v621 = vmax.f32 %v477, 0.0
    %v622 = vmax.f32 %v588, 0.0
    %v623 = vmax.f32 %v590, 0.0
    %v624 = vld [vmem:[%s3] sm:$0xff]
    %v625 = vld [vmem:[%s3 + $0x8] sm:$0xff]
    %v626 = vld [vmem:[%s3 + $0x10] sm:$0xff]
    %v627 = vld [vmem:[%s3 + $0x18] sm:$0xff]
    %v628 = vld [vmem:[%s3 + $0x20] sm:$0xff]
    %v629 = vld [vmem:[%s3 + $0x28] sm:$0xff]
    %v630 = vld [vmem:[%s3 + $0x30] sm:$0xff]
    %v631 = vld [vmem:[%s3 + $0x38] sm:$0xff]
    %v632 = vld [vmem:[%s4] sm:$0xff]
    %v633 = vld [vmem:[%s4 + $0x8] sm:$0xff]
    %v634 = vld [vmem:[%s4 + $0x10] sm:$0xff]
    %v635 = vld [vmem:[%s4 + $0x18] sm:$0xff]
    %v636 = vld [vmem:[%s4 + $0x20] sm:$0xff]
    %v637 = vld [vmem:[%s4 + $0x28] sm:$0xff]
    %v638 = vld [vmem:[%s4 + $0x30] sm:$0xff]
    %v639 = vld [vmem:[%s4 + $0x38] sm:$0xff]
    %641 = vset.pattern.permute.xlu0 0
    %642 = vperm.xlu0 %641, %v632
    %v643 = vpop.permute.xlu0 %642
    %646 = vset.pattern.permute.xlu0 0
    %647 = vperm.xlu0 %646, %v633
    %v648 = vpop.permute.xlu0 %647
    %651 = vset.pattern.permute.xlu0 0
    %652 = vperm.xlu0 %651, %v634
    %v653 = vpop.permute.xlu0 %652
    %656 = vset.pattern.permute.xlu0 0
    %657 = vperm.xlu0 %656, %v635
    %v658 = vpop.permute.xlu0 %657
    %661 = vset.pattern.permute.xlu0 0
    %662 = vperm.xlu0 %661, %v636
    %v663 = vpop.permute.xlu0 %662
    %666 = vset.pattern.permute.xlu0 0
    %667 = vperm.xlu0 %666, %v637
    %v668 = vpop.permute.xlu0 %667
    %671 = vset.pattern.permute.xlu0 0
    %672 = vperm.xlu0 %671, %v638
    %v673 = vpop.permute.xlu0 %672
    %676 = vset.pattern.permute.xlu0 0
    %677 = vperm.xlu0 %676, %v639
    %v678 = vpop.permute.xlu0 %677
    %vm680 = vcmask 523264
    %v682 = vsel %vm680, %v624, 0
    %v685 = vsel %vm680, %v625, 0
    %v688 = vsel %vm680, %v626, 0
    %v691 = vsel %vm680, %v627, 0
    %v694 = vsel %vm680, %v628, 0
    %v697 = vsel %vm680, %v629, 0
    %v700 = vsel %vm680, %v630, 0
    %v703 = vsel %vm680, %v631, 0
    %705 = vmatprep.subr.mxu0 0.0
    %706 = vmatpush1.msra.mxu0 0.0
    %707 = vmatprep.subr.mxu0 0.0
    %708 = vmatpush1.msra.mxu0 0.0
    %709 = vmatprep.subr.mxu0 0.0
    %710 = vmatpush1.msra.mxu0 0.0
    %711 = vmatprep.subr.mxu0 0.0
    %712 = vmatpush1.msra.mxu0 0.0
    %713 = vmatprep.subr.mxu0 0.0
    %714 = vmatpush1.msra.mxu0 0.0
    %715 = vmatprep.subr.mxu0 0.0
    %716 = vmatpush1.msra.mxu0 0.0
    %717 = vmatprep.subr.mxu0 0.0
    %718 = vmatpush1.msra.mxu0 0.0
    %719 = vmatprep.subr.mxu0 0.0
    %720 = vmatpush1.msra.mxu0 0.0
    %721 = vmatprep.subr.mxu0 %v621
    %722 = vmatpush1.msra.mxu0 %v620
    %723 = vmatprep.subr.mxu0 %v617
    %724 = vmatpush1.msra.mxu0 %v616
    %725 = vmatprep.subr.mxu0 %v613
    %726 = vmatpush1.msra.mxu0 %v612
    %727 = vmatprep.subr.mxu0 %v609
    %728 = vmatpush1.msra.mxu0 %v608
    %729 = vmatprep.subr.mxu0 %v605
    %730 = vmatpush1.msra.mxu0 %v604
    %731 = vmatprep.subr.mxu0 %v601
    %732 = vmatpush1.msra.mxu0 %v600
    %733 = vmatprep.subr.mxu0 %v597
    %734 = vmatpush1.msra.mxu0 %v596
    %735 = vmatprep.subr.mxu0 %v593
    %736 = vmatpush1.msra.mxu0 %v592
    %737 = vmatprep.subr.mxu0 0.0
    %738 = vmatpush2.msra.mxu0 0.0
    %739 = vmatprep.subr.mxu0 0.0
    %740 = vmatpush2.msra.mxu0 0.0
    %741 = vmatprep.subr.mxu0 0.0
    %742 = vmatpush2.msra.mxu0 0.0
    %743 = vmatprep.subr.mxu0 0.0
    %744 = vmatpush2.msra.mxu0 0.0
    %745 = vmatprep.subr.mxu0 0.0
    %746 = vmatpush2.msra.mxu0 0.0
    %747 = vmatprep.subr.mxu0 0.0
    %748 = vmatpush2.msra.mxu0 0.0
    %749 = vmatprep.subr.mxu0 0.0
    %750 = vmatpush2.msra.mxu0 0.0
    %751 = vmatprep.subr.mxu0 0.0
    %752 = vmatpush2.msra.mxu0 0.0
    %753 = vmatprep.subr.mxu0 0.0
    %754 = vmatpush2.msra.mxu0 0.0
    %755 = vmatprep.subr.mxu0 0.0
    %756 = vmatpush2.msra.mxu0 0.0
    %757 = vmatprep.subr.mxu0 0.0
    %758 = vmatpush2.msra.mxu0 0.0
    %759 = vmatprep.subr.mxu0 0.0
    %760 = vmatpush2.msra.mxu0 0.0
    %761 = vmatprep.subr.mxu0 0.0
    %762 = vmatpush2.msra.mxu0 0.0
    %763 = vmatprep.subr.mxu0 0.0
    %764 = vmatpush2.msra.mxu0 0.0
    %765 = vmatprep.subr.mxu0 0.0
    %766 = vmatpush2.msra.mxu0 0.0
    %767 = vmatprep.subr.mxu0 0.0
    %768 = vmatpush2.msra.mxu0 0.0
    %769 = vmatprep.mubr.f32.mxu0 0.0
    %770 = vmatmul.mubr.f32.gmra.mxu0 %v682
    %v771 = vpop.f32.mrf.mxu0
    %v772 = vadd.f32 %v643, %v771
    %v773 = vpop.f32.mrf.mxu0
    %v774 = vadd.f32 %v643, %v773
    %775 = vmatprep.mubr.f32.mxu0 0.0
    %776 = vmatmul.mubr.f32.gmra.mxu0 %v685
    %v777 = vpop.f32.mrf.mxu0
    %v778 = vadd.f32 %v648, %v777
    %v779 = vpop.f32.mrf.mxu0
    %v780 = vadd.f32 %v648, %v779
    %781 = vmatprep.mubr.f32.mxu0 0.0
    %782 = vmatmul.mubr.f32.gmra.mxu0 %v688
    %v783 = vpop.f32.mrf.mxu0
    %v784 = vadd.f32 %v653, %v783
    %v785 = vpop.f32.mrf.mxu0
    %v786 = vadd.f32 %v653, %v785
    %787 = vmatprep.mubr.f32.mxu0 0.0
    %788 = vmatmul.mubr.f32.gmra.mxu0 %v691
    %v789 = vpop.f32.mrf.mxu0
    %v790 = vadd.f32 %v658, %v789
    %v791 = vpop.f32.mrf.mxu0
    %v792 = vadd.f32 %v658, %v791
    %793 = vmatprep.mubr.f32.mxu0 0.0
    %794 = vmatmul.mubr.f32.gmra.mxu0 %v694
    %v795 = vpop.f32.mrf.mxu0
    %v796 = vadd.f32 %v663, %v795
    %v797 = vpop.f32.mrf.mxu0
    %v798 = vadd.f32 %v663, %v797
    %799 = vmatprep.mubr.f32.mxu0 0.0
    %800 = vmatmul.mubr.f32.gmra.mxu0 %v697
    %v801 = vpop.f32.mrf.mxu0
    %v802 = vadd.f32 %v668, %v801
    %v803 = vpop.f32.mrf.mxu0
    %v804 = vadd.f32 %v668, %v803
    %805 = vmatprep.mubr.f32.mxu0 0.0
    %806 = vmatmul.mubr.f32.gmra.mxu0 %v700
    %v807 = vpop.f32.mrf.mxu0
    %v808 = vadd.f32 %v673, %v807
    %v809 = vpop.f32.mrf.mxu0
    %v810 = vadd.f32 %v673, %v809
    %811 = vmatprep.mubr.f32.mxu0 0.0
    %812 = vmatmul.mubr.f32.gmra.mxu0 %v703
    %v813 = vpop.f32.mrf.mxu0
    %v814 = vadd.f32 %v678, %v813
    %v815 = vpop.f32.mrf.mxu0
    %v816 = vadd.f32 %v678, %v815
    %817 = vdwg.mxu0
    %818 = vmatprep.subr.mxu0 0.0
    %819 = vmatpush1.msra.mxu0 0.0
    %820 = vmatprep.subr.mxu0 0.0
    %821 = vmatpush1.msra.mxu0 0.0
    %822 = vmatprep.subr.mxu0 0.0
    %823 = vmatpush1.msra.mxu0 0.0
    %824 = vmatprep.subr.mxu0 0.0
    %825 = vmatpush1.msra.mxu0 0.0
    %826 = vmatprep.subr.mxu0 0.0
    %827 = vmatpush1.msra.mxu0 0.0
    %828 = vmatprep.subr.mxu0 0.0
    %829 = vmatpush1.msra.mxu0 0.0
    %830 = vmatprep.subr.mxu0 0.0
    %831 = vmatpush1.msra.mxu0 0.0
    %832 = vmatprep.subr.mxu0 0.0
    %833 = vmatpush1.msra.mxu0 0.0
    %834 = vmatprep.subr.mxu0 %v623
    %835 = vmatpush1.msra.mxu0 %v622
    %836 = vmatprep.subr.mxu0 %v619
    %837 = vmatpush1.msra.mxu0 %v618
    %838 = vmatprep.subr.mxu0 %v615
    %839 = vmatpush1.msra.mxu0 %v614
    %840 = vmatprep.subr.mxu0 %v611
    %841 = vmatpush1.msra.mxu0 %v610
    %842 = vmatprep.subr.mxu0 %v607
    %843 = vmatpush1.msra.mxu0 %v606
    %844 = vmatprep.subr.mxu0 %v603
    %845 = vmatpush1.msra.mxu0 %v602
    %846 = vmatprep.subr.mxu0 %v599
    %847 = vmatpush1.msra.mxu0 %v598
    %848 = vmatprep.subr.mxu0 %v595
    %849 = vmatpush1.msra.mxu0 %v594
    %850 = vmatprep.subr.mxu0 0.0
    %851 = vmatpush2.msra.mxu0 0.0
    %852 = vmatprep.subr.mxu0 0.0
    %853 = vmatpush2.msra.mxu0 0.0
    %854 = vmatprep.subr.mxu0 0.0
    %855 = vmatpush2.msra.mxu0 0.0
    %856 = vmatprep.subr.mxu0 0.0
    %857 = vmatpush2.msra.mxu0 0.0
    %858 = vmatprep.subr.mxu0 0.0
    %859 = vmatpush2.msra.mxu0 0.0
    %860 = vmatprep.subr.mxu0 0.0
    %861 = vmatpush2.msra.mxu0 0.0
    %862 = vmatprep.subr.mxu0 0.0
    %863 = vmatpush2.msra.mxu0 0.0
    %864 = vmatprep.subr.mxu0 0.0
    %865 = vmatpush2.msra.mxu0 0.0
    %866 = vmatprep.subr.mxu0 0.0
    %867 = vmatpush2.msra.mxu0 0.0
    %868 = vmatprep.subr.mxu0 0.0
    %869 = vmatpush2.msra.mxu0 0.0
    %870 = vmatprep.subr.mxu0 0.0
    %871 = vmatpush2.msra.mxu0 0.0
    %872 = vmatprep.subr.mxu0 0.0
    %873 = vmatpush2.msra.mxu0 0.0
    %874 = vmatprep.subr.mxu0 0.0
    %875 = vmatpush2.msra.mxu0 0.0
    %876 = vmatprep.subr.mxu0 0.0
    %877 = vmatpush2.msra.mxu0 0.0
    %878 = vmatprep.subr.mxu0 0.0
    %879 = vmatpush2.msra.mxu0 0.0
    %880 = vmatprep.subr.mxu0 0.0
    %881 = vmatpush2.msra.mxu0 0.0
    %882 = vmatprep.mubr.f32.mxu0 0.0
    %883 = vmatmul.mubr.f32.gmra.mxu0 %v682
    %v884 = vpop.f32.mrf.mxu0
    %v885 = vadd.f32 %v643, %v884
    %v886 = vpop.f32.mrf.mxu0
    %v887 = vadd.f32 %v643, %v886
    %888 = vmatprep.mubr.f32.mxu0 0.0
    %889 = vmatmul.mubr.f32.gmra.mxu0 %v685
    %v890 = vpop.f32.mrf.mxu0
    %v891 = vadd.f32 %v648, %v890
    %v892 = vpop.f32.mrf.mxu0
    %v893 = vadd.f32 %v648, %v892
    %894 = vmatprep.mubr.f32.mxu0 0.0
    %895 = vmatmul.mubr.f32.gmra.mxu0 %v688
    %v896 = vpop.f32.mrf.mxu0
    %v897 = vadd.f32 %v653, %v896
    %v898 = vpop.f32.mrf.mxu0
    %v899 = vadd.f32 %v653, %v898
    %900 = vmatprep.mubr.f32.mxu0 0.0
    %901 = vmatmul.mubr.f32.gmra.mxu0 %v691
    %v902 = vpop.f32.mrf.mxu0
    %v903 = vadd.f32 %v658, %v902
    %v904 = vpop.f32.mrf.mxu0
    %v905 = vadd.f32 %v658, %v904
    %906 = vmatprep.mubr.f32.mxu0 0.0
    %907 = vmatmul.mubr.f32.gmra.mxu0 %v694
    %v908 = vpop.f32.mrf.mxu0
    %v909 = vadd.f32 %v663, %v908
    %v910 = vpop.f32.mrf.mxu0
    %v911 = vadd.f32 %v663, %v910
    %912 = vmatprep.mubr.f32.mxu0 0.0
    %913 = vmatmul.mubr.f32.gmra.mxu0 %v697
    %v914 = vpop.f32.mrf.mxu0
    %v915 = vadd.f32 %v668, %v914
    %v916 = vpop.f32.mrf.mxu0
    %v917 = vadd.f32 %v668, %v916
    %918 = vmatprep.mubr.f32.mxu0 0.0
    %919 = vmatmul.mubr.f32.gmra.mxu0 %v700
    %v920 = vpop.f32.mrf.mxu0
    %v921 = vadd.f32 %v673, %v920
    %v922 = vpop.f32.mrf.mxu0
    %v923 = vadd.f32 %v673, %v922
    %924 = vmatprep.mubr.f32.mxu0 0.0
    %925 = vmatmul.mubr.f32.gmra.mxu0 %v703
    %v926 = vpop.f32.mrf.mxu0
    %v927 = vadd.f32 %v678, %v926
    %v928 = vpop.f32.mrf.mxu0
    %v929 = vadd.f32 %v678, %v928
    %930 = vdwg.mxu0
    %v931 = vmax.f32 %v772, 0.0
    %v932 = vmax.f32 %v774, 0.0
    %v933 = vmax.f32 %v885, 0.0
    %v934 = vmax.f32 %v887, 0.0
    %v935 = vmax.f32 %v778, 0.0
    %v936 = vmax.f32 %v780, 0.0
    %v937 = vmax.f32 %v891, 0.0
    %v938 = vmax.f32 %v893, 0.0
    %v939 = vmax.f32 %v784, 0.0
    %v940 = vmax.f32 %v786, 0.0
    %v941 = vmax.f32 %v897, 0.0
    %v942 = vmax.f32 %v899, 0.0
    %v943 = vmax.f32 %v790, 0.0
    %v944 = vmax.f32 %v792, 0.0
    %v945 = vmax.f32 %v903, 0.0
    %v946 = vmax.f32 %v905, 0.0
    %v947 = vmax.f32 %v796, 0.0
    %v948 = vmax.f32 %v798, 0.0
    %v949 = vmax.f32 %v909, 0.0
    %v950 = vmax.f32 %v911, 0.0
    %v951 = vmax.f32 %v802, 0.0
    %v952 = vmax.f32 %v804, 0.0
    %v953 = vmax.f32 %v915, 0.0
    %v954 = vmax.f32 %v917, 0.0
    %v955 = vmax.f32 %v808, 0.0
    %v956 = vmax.f32 %v810, 0.0
    %v957 = vmax.f32 %v921, 0.0
    %v958 = vmax.f32 %v923, 0.0
    %v959 = vmax.f32 %v814, 0.0
    %v960 = vmax.f32 %v816, 0.0
    %v961 = vmax.f32 %v927, 0.0
    %v962 = vmax.f32 %v929, 0.0
    %v963 = vld [vmem:[%s5] sm:$0x1]
    %v964 = vld [vmem:[#allocation2] sm:$0x1]
    %966 = vset.pattern.permute.xlu0 0
    %967 = vperm.xlu0 %966, %v964
    %v968 = vpop.permute.xlu0 %967
    %v970 = vlaneseq
    %v971 = vshrl.u32 %v970, 7
    %v972 = vsub.s32 0, %v971
    %v973 = vrot.slane %v968, %v972
    %v975 = vsel %vm680, %v963, 0
    %977 = vmatprep.subr.mxu0 0.0
    %978 = vmatpush1.msra.mxu0 0.0
    %979 = vmatprep.subr.mxu0 0.0
    %980 = vmatpush1.msra.mxu0 0.0
    %981 = vmatprep.subr.mxu0 0.0
    %982 = vmatpush1.msra.mxu0 0.0
    %983 = vmatprep.subr.mxu0 0.0
    %984 = vmatpush1.msra.mxu0 0.0
    %985 = vmatprep.subr.mxu0 0.0
    %986 = vmatpush1.msra.mxu0 0.0
    %987 = vmatprep.subr.mxu0 0.0
    %988 = vmatpush1.msra.mxu0 0.0
    %989 = vmatprep.subr.mxu0 0.0
    %990 = vmatpush1.msra.mxu0 0.0
    %991 = vmatprep.subr.mxu0 0.0
    %992 = vmatpush1.msra.mxu0 0.0
    %993 = vmatprep.subr.mxu0 %v960
    %994 = vmatpush1.msra.mxu0 %v959
    %995 = vmatprep.subr.mxu0 %v956
    %996 = vmatpush1.msra.mxu0 %v955
    %997 = vmatprep.subr.mxu0 %v952
    %998 = vmatpush1.msra.mxu0 %v951
    %999 = vmatprep.subr.mxu0 %v948
    %1000 = vmatpush1.msra.mxu0 %v947
    %1001 = vmatprep.subr.mxu0 %v944
    %1002 = vmatpush1.msra.mxu0 %v943
    %1003 = vmatprep.subr.mxu0 %v940
    %1004 = vmatpush1.msra.mxu0 %v939
    %1005 = vmatprep.subr.mxu0 %v936
    %1006 = vmatpush1.msra.mxu0 %v935
    %1007 = vmatprep.subr.mxu0 %v932
    %1008 = vmatpush1.msra.mxu0 %v931
    %1009 = vmatprep.subr.mxu0 0.0
    %1010 = vmatpush2.msra.mxu0 0.0
    %1011 = vmatprep.subr.mxu0 0.0
    %1012 = vmatpush2.msra.mxu0 0.0
    %1013 = vmatprep.subr.mxu0 0.0
    %1014 = vmatpush2.msra.mxu0 0.0
    %1015 = vmatprep.subr.mxu0 0.0
    %1016 = vmatpush2.msra.mxu0 0.0
    %1017 = vmatprep.subr.mxu0 0.0
    %1018 = vmatpush2.msra.mxu0 0.0
    %1019 = vmatprep.subr.mxu0 0.0
    %1020 = vmatpush2.msra.mxu0 0.0
    %1021 = vmatprep.subr.mxu0 0.0
    %1022 = vmatpush2.msra.mxu0 0.0
    %1023 = vmatprep.subr.mxu0 0.0
    %1024 = vmatpush2.msra.mxu0 0.0
    %1025 = vmatprep.subr.mxu0 0.0
    %1026 = vmatpush2.msra.mxu0 0.0
    %1027 = vmatprep.subr.mxu0 0.0
    %1028 = vmatpush2.msra.mxu0 0.0
    %1029 = vmatprep.subr.mxu0 0.0
    %1030 = vmatpush2.msra.mxu0 0.0
    %1031 = vmatprep.subr.mxu0 0.0
    %1032 = vmatpush2.msra.mxu0 0.0
    %1033 = vmatprep.subr.mxu0 0.0
    %1034 = vmatpush2.msra.mxu0 0.0
    %1035 = vmatprep.subr.mxu0 0.0
    %1036 = vmatpush2.msra.mxu0 0.0
    %1037 = vmatprep.subr.mxu0 0.0
    %1038 = vmatpush2.msra.mxu0 0.0
    %1039 = vmatprep.subr.mxu0 0.0
    %1040 = vmatpush2.msra.mxu0 0.0
    %1041 = vmatprep.mubr.f32.mxu0 0.0
    %1042 = vmatmul.mubr.f32.gmra.mxu0 %v975
    %v1043 = vpop.f32.mrf.mxu0
    %v1044 = vadd.f32 %v973, %v1043
    %v1045 = vpop.f32.mrf.mxu0
    %v1046 = vadd.f32 %v973, %v1045
    %1047 = vdwg.mxu0
    %1048 = vmatprep.subr.mxu0 0.0
    %1049 = vmatpush1.msra.mxu0 0.0
    %1050 = vmatprep.subr.mxu0 0.0
    %1051 = vmatpush1.msra.mxu0 0.0
    %1052 = vmatprep.subr.mxu0 0.0
    %1053 = vmatpush1.msra.mxu0 0.0
    %1054 = vmatprep.subr.mxu0 0.0
    %1055 = vmatpush1.msra.mxu0 0.0
    %1056 = vmatprep.subr.mxu0 0.0
    %1057 = vmatpush1.msra.mxu0 0.0
    %1058 = vmatprep.subr.mxu0 0.0
    %1059 = vmatpush1.msra.mxu0 0.0
    %1060 = vmatprep.subr.mxu0 0.0
    %1061 = vmatpush1.msra.mxu0 0.0
    %1062 = vmatprep.subr.mxu0 0.0
    %1063 = vmatpush1.msra.mxu0 0.0
    %1064 = vmatprep.subr.mxu0 %v962
    %1065 = vmatpush1.msra.mxu0 %v961
    %1066 = vmatprep.subr.mxu0 %v958
    %1067 = vmatpush1.msra.mxu0 %v957
    %1068 = vmatprep.subr.mxu0 %v954
    %1069 = vmatpush1.msra.mxu0 %v953
    %1070 = vmatprep.subr.mxu0 %v950
    %1071 = vmatpush1.msra.mxu0 %v949
    %1072 = vmatprep.subr.mxu0 %v946
    %1073 = vmatpush1.msra.mxu0 %v945
    %1074 = vmatprep.subr.mxu0 %v942
    %1075 = vmatpush1.msra.mxu0 %v941
    %1076 = vmatprep.subr.mxu0 %v938
    %1077 = vmatpush1.msra.mxu0 %v937
    %1078 = vmatprep.subr.mxu0 %v934
    %1079 = vmatpush1.msra.mxu0 %v933
    %1080 = vmatprep.subr.mxu0 0.0
    %1081 = vmatpush2.msra.mxu0 0.0
    %1082 = vmatprep.subr.mxu0 0.0
    %1083 = vmatpush2.msra.mxu0 0.0
    %1084 = vmatprep.subr.mxu0 0.0
    %1085 = vmatpush2.msra.mxu0 0.0
    %1086 = vmatprep.subr.mxu0 0.0
    %1087 = vmatpush2.msra.mxu0 0.0
    %1088 = vmatprep.subr.mxu0 0.0
    %1089 = vmatpush2.msra.mxu0 0.0
    %1090 = vmatprep.subr.mxu0 0.0
    %1091 = vmatpush2.msra.mxu0 0.0
    %1092 = vmatprep.subr.mxu0 0.0
    %1093 = vmatpush2.msra.mxu0 0.0
    %1094 = vmatprep.subr.mxu0 0.0
    %1095 = vmatpush2.msra.mxu0 0.0
    %1096 = vmatprep.subr.mxu0 0.0
    %1097 = vmatpush2.msra.mxu0 0.0
    %1098 = vmatprep.subr.mxu0 0.0
    %1099 = vmatpush2.msra.mxu0 0.0
    %1100 = vmatprep.subr.mxu0 0.0
    %1101 = vmatpush2.msra.mxu0 0.0
    %1102 = vmatprep.subr.mxu0 0.0
    %1103 = vmatpush2.msra.mxu0 0.0
    %1104 = vmatprep.subr.mxu0 0.0
    %1105 = vmatpush2.msra.mxu0 0.0
    %1106 = vmatprep.subr.mxu0 0.0
    %1107 = vmatpush2.msra.mxu0 0.0
    %1108 = vmatprep.subr.mxu0 0.0
    %1109 = vmatpush2.msra.mxu0 0.0
    %1110 = vmatprep.subr.mxu0 0.0
    %1111 = vmatpush2.msra.mxu0 0.0
    %1112 = vmatprep.mubr.f32.mxu0 0.0
    %1113 = vmatmul.mubr.f32.gmra.mxu0 %v975
    %v1114 = vpop.f32.mrf.mxu0
    %v1115 = vadd.f32 %v973, %v1114
    %v1116 = vpop.f32.mrf.mxu0
    %v1117 = vadd.f32 %v973, %v1116
    %1118 = vdwg.mxu0
    %v1123 = vcombine.low %v1044, %v1046
    %v1124 = vcombine.low %v1115, %v1117
    %v1126 = vunpack.c.l.s4 1966171168
    %v1127 = vunpack.c.0.s8 %v1126
    %v1128 = vlaneseq
    %v1129 = vshrl.u32 %v1128, 7
    %v1130 = vsub.s32 %v1127, %v1129
    %v1131 = vrot.slane %v1123, %v1130
    %v1133 = vunpack.c.l.s4 1966171168
    %v1134 = vunpack.c.0.s8 %v1133
    %v1135 = vlaneseq
    %v1136 = vshrl.u32 %v1135, 7
    %v1137 = vsub.s32 %v1134, %v1136
    %v1138 = vrot.slane %v1124, %v1137
    %v1139 = vcombine.low %v1131, %v1138
    %v1141 = vunpack.c.l.s4 1966171168
    %v1142 = vunpack.c.0.s8 %v1141
    %v1143 = vlaneseq
    %v1144 = vshrl.u32 %v1143, 7
    %v1145 = vsub.s32 %v1142, %v1144
    %v1146 = vrot.slane %v1139, %v1145
    %v1148 = vlaneseq
    %vm1149 = vcmp.ge.s32.totalorder %v1148, 0
    %vm1150 = vcmp.lt.s32.totalorder %v1148, 512
    %vm1151 = vmand %vm1149, %vm1150
    %1152 = vst.msk [vmem:[#allocation3] sm:$0xf] %vm1151, %v1146
    // Predicated region
    $region30: #{tpu_custom_call.1} parent=1 // pred_check
      _
    $region31: #{tpu_custom_call.1} parent=1 // pred_check_branch
      %1154 = sbr.rel (0) target = $region33
    $region32: #{tpu_custom_call.1} parent=1 // pred_region
      %s1156 = ssub.s32 64, 64
      %1157 = vsyncadd [#allocation4], %s1156
      %s1159 = sshll.u32 [#allocation3], 4
      %s1160 = int_to_ptr.vmem [resolvable:$true] %s1159
      %1162 = dma.vmem_to_hbm [thread:$0]  %s1160, 64, %s7, [#allocation4]
    $region33: #{tpu_custom_call.1} parent=1 // pred_fallthru
      _
    // Predicated region
    $region34: #{tpu_custom_call.1} parent=1 // pred_check
      _
    $region35: #{tpu_custom_call.1} parent=1 // pred_check_branch
      %1164 = sbr.rel (0) target = $region37
    $region36: #{tpu_custom_call.1} parent=1 // pred_region
      %1165 = dma.done [#allocation4], 64
    $region37: #{tpu_custom_call.1} parent=1 // pred_fallthru
      _
    %1166 = vsyncpa [#allocation4], 1

</llo_original>
